<compile_context>
chip_gen: v7x
topology: tpu7x:2x2x1
jax: 0.10.0
libtpu: 0.0.40
codegen_flags: <defaults>
</compile_context>

<pallas_src>
import jax
import jax.numpy as jnp
from jax.experimental import pallas as pl
from jax.experimental.pallas import tpu as pltpu


def _cdiv(a, b):
    return -(-a // b)


def _conv1x1_hardsig_kernel(w_ref, b_ref, x_ref, o_ref):
    # w_ref: SMEM (Cout*Cin,) f32   pre-scaled weights (W/6), row-major [co*Cin + ci]
    # b_ref: SMEM (Cout,)     f32   folded bias (b+2)/6
    # x_ref: VMEM (1, Cin, R, 128) f32   dense pixel slabs (pixels on sublane+lane)
    # o_ref: VMEM (1, Cout, R, 128) f32
    cin = x_ref.shape[1]
    cout = o_ref.shape[1]
    for co in range(cout):
        # Scalar(SMEM) x vector FMA chain; bias folded into the first term.
        acc = x_ref[0, 0] * w_ref[co * cin] + b_ref[co]
        for ci in range(1, cin):
            acc = acc + x_ref[0, ci] * w_ref[co * cin + ci]
        # Folded epilogue: clip to [0, 1]; store this channel directly (dense slab).
        o_ref[0, co] = jnp.clip(acc, 0.0, 1.0).astype(o_ref.dtype)


def conv1x1_pad1_hardsig(x_nchw, weight, bias):
    """clamp(Conv2d(Cin, Cout, 1, stride=1, padding=1)(x) + 2, 0, 6) / 6

    x_nchw : (N, Cin, H, W)              float32
    weight : (Cout, Cin) or (Cout, Cin, 1, 1)
    bias   : (Cout,)
    returns: (N, Cout, H+2, W+2)         float32
    """
    N, Cin, H, W = x_nchw.shape
    Cout = bias.shape[0]
    w2 = jnp.reshape(weight, (Cout, Cin)).astype(jnp.float32)

    Hp, Wp = H + 2, W + 2          # padding=1 on a 1x1 conv enlarges the spatial map
    P = Hp * Wp
    LANE, SUB = 128, 8
    rows = _cdiv(P, LANE)

    # ---- pixel-tile sizing ---------------------------------------------------
    # Per grid step the kernel moves (Cin+Cout)*R*128*4 bytes. R_CAP = 1024 gives
    # ~6.8 MB of in+out traffic per step (amortizes the ~0.35us/step overhead even
    # at v7x's ~3.2 TB/s HBM) with a ~13.6 MB double-buffered VMEM footprint.
    R_CAP = 1024
    if rows > R_CAP:
        R = R_CAP                                   # many parallel blocks already
        rows_pad = _cdiv(rows, R) * R
    elif N == 1 and rows >= 64:
        # v7x has 2 TensorCores; give the single-image case two parallel pixel
        # blocks.  Blocks must be (8,128)-aligned, so round rows up to 2*8.
        rows_pad = _cdiv(rows, 2 * SUB) * (2 * SUB)
        R = rows_pad // 2
    else:
        R = max(rows, 1)                            # one block per image; N axis
        rows_pad = R                                # supplies grid parallelism
    P_pad = rows_pad * LANE
    n_blocks = rows_pad // R

    # ---- input relayout: spatial zero-pad, flatten pixels, pad to (rows,128) --
    # Spatially pre-padding the 5-channel input lets the kernel emit the full
    # (H+2, W+2) map directly (bias-only border), avoiding any post-kernel
    # re-read/re-write of the 8-channel output.
    x = x_nchw.astype(jnp.float32)
    xp = jnp.pad(x, ((0, 0), (0, 0), (1, 1), (1, 1)))       # (N, Cin, Hp, Wp)
    xp = xp.reshape(N, Cin, P)
    if P_pad != P:
        xp = jnp.pad(xp, ((0, 0), (0, 0), (0, P_pad - P)))
    x4 = xp.reshape(N, Cin, rows_pad, LANE)

    # ---- fold the epilogue into weights/bias ----------------------------------
    #   clamp(Wx + b + 2, 0, 6)/6 == clip((W/6)x + (b+2)/6, 0, 1)
    w_fold = (w2 * (1.0 / 6.0)).reshape(Cout * Cin)
    b_fold = (bias.astype(jnp.float32) + 2.0) * (1.0 / 6.0)

    out4 = pl.pallas_call(
        _conv1x1_hardsig_kernel,
        out_shape=jax.ShapeDtypeStruct((N, Cout, rows_pad, LANE), jnp.float32),
        grid_spec=pltpu.PrefetchScalarGridSpec(
            num_scalar_prefetch=0,
            grid=(N, n_blocks),
            in_specs=[
                pl.BlockSpec(memory_space=pltpu.MemorySpace.SMEM),    # folded weights
                pl.BlockSpec(memory_space=pltpu.MemorySpace.SMEM),    # folded bias
                pl.BlockSpec((1, Cin, R, LANE), lambda n, i: (n, 0, i, 0)),
            ],
            out_specs=pl.BlockSpec((1, Cout, R, LANE), lambda n, i: (n, 0, i, 0)),
        ),
        compiler_params=pltpu.CompilerParams(
            dimension_semantics=("parallel", "parallel")),
    )(w_fold, b_fold, x4)

    out = out4.reshape(N, Cout, P_pad)
    if P_pad != P:
        out = out[:, :, :P]
    return out.reshape(N, Cout, Hp, Wp)


if __name__ == "__main__":
    key = jax.random.PRNGKey(0)
    kx, kw, kb = jax.random.split(key, 3)

    # Small shapes consistent with the module: Conv2d(5 -> 8, kernel 1, padding 1).
    N, Cin, H, W = 2, 5, 16, 16
    Cout = 8

    x = jax.random.normal(kx, (N, Cin, H, W), dtype=jnp.float32)
    bound = 1.0 / (Cin ** 0.5)
    weight = jax.random.uniform(kw, (Cout, Cin), minval=-bound, maxval=bound,
                                dtype=jnp.float32)
    bias = jax.random.uniform(kb, (Cout,), minval=-bound, maxval=bound,
                              dtype=jnp.float32)

    fn = jax.jit(conv1x1_pad1_hardsig)
    out = jax.block_until_ready(fn(x, weight, bias))

    # Pure-JAX reference of the original module semantics.
    x_pad = jnp.pad(x, ((0, 0), (0, 0), (1, 1), (1, 1)))
    ref = jnp.einsum("nchw,oc->nohw", x_pad, weight) + bias[None, :, None, None]
    ref = jnp.clip(ref + 2.0, 0.0, 6.0) / 6.0

    assert out.shape == (N, Cout, H + 2, W + 2), out.shape
    assert jnp.allclose(out, ref, atol=1e-5), float(jnp.max(jnp.abs(out - ref)))
    print("KERNEL_OK")
</pallas_src>

<mosaic_0001>
module attributes {stable_mosaic.version = 11 : i64} {
  func.func @_conv1x1_hardsig_kernel(%arg0: i32, %arg1: i32, %arg2: memref<40xf32, #tpu.memory_space<smem>>, %arg3: memref<8xf32, #tpu.memory_space<smem>>, %arg4: memref<1x5x3x128xf32, #tpu.memory_space<vmem>>, %arg5: memref<1x8x3x128xf32, #tpu.memory_space<vmem>>) attributes {dimension_semantics = [#tpu.dimension_semantics<parallel>, #tpu.dimension_semantics<parallel>], iteration_bounds = array<i64: 2, 1>, scalar_prefetch = 0 : i64, scratch_operands = 0 : i64, tpu.core_type = #tpu.core_type<tc>, window_params = [{transform_indices = @transform_0, window_bounds = array<i64: 40>}, {transform_indices = @transform_1, window_bounds = array<i64: 8>}, {transform_indices = @transform_2, window_bounds = array<i64: 1, 5, 3, 128>}, {transform_indices = @transform_3, window_bounds = array<i64: 1, 8, 3, 128>}]} {
    %c0 = arith.constant 0 : index
    %c0_0 = arith.constant 0 : index
    %c0_1 = arith.constant 0 : index
    %c0_2 = arith.constant 0 : index
    %0 = vector.load %arg4[%c0, %c0_0, %c0_1, %c0_2] : memref<1x5x3x128xf32, #tpu.memory_space<vmem>>, vector<1x1x3x128xf32>
    %1 = vector.shape_cast %0 : vector<1x1x3x128xf32> to vector<3x128xf32>
    %c0_3 = arith.constant 0 : index
    %2 = memref.load %arg2[%c0_3] : memref<40xf32, #tpu.memory_space<smem>>
    %3 = vector.broadcast %2 : f32 to vector<3x128xf32>
    %4 = arith.mulf %1, %3 : vector<3x128xf32>
    %c0_4 = arith.constant 0 : index
    %5 = memref.load %arg3[%c0_4] : memref<8xf32, #tpu.memory_space<smem>>
    %6 = vector.broadcast %5 : f32 to vector<3x128xf32>
    %7 = arith.addf %4, %6 : vector<3x128xf32>
    %c0_5 = arith.constant 0 : index
    %c1 = arith.constant 1 : index
    %c0_6 = arith.constant 0 : index
    %c0_7 = arith.constant 0 : index
    %8 = vector.load %arg4[%c0_5, %c1, %c0_6, %c0_7] : memref<1x5x3x128xf32, #tpu.memory_space<vmem>>, vector<1x1x3x128xf32>
    %9 = vector.shape_cast %8 : vector<1x1x3x128xf32> to vector<3x128xf32>
    %c1_8 = arith.constant 1 : index
    %10 = memref.load %arg2[%c1_8] : memref<40xf32, #tpu.memory_space<smem>>
    %11 = vector.broadcast %10 : f32 to vector<3x128xf32>
    %12 = arith.mulf %9, %11 : vector<3x128xf32>
    %13 = arith.addf %7, %12 : vector<3x128xf32>
    %c0_9 = arith.constant 0 : index
    %c2 = arith.constant 2 : index
    %c0_10 = arith.constant 0 : index
    %c0_11 = arith.constant 0 : index
    %14 = vector.load %arg4[%c0_9, %c2, %c0_10, %c0_11] : memref<1x5x3x128xf32, #tpu.memory_space<vmem>>, vector<1x1x3x128xf32>
    %15 = vector.shape_cast %14 : vector<1x1x3x128xf32> to vector<3x128xf32>
    %c2_12 = arith.constant 2 : index
    %16 = memref.load %arg2[%c2_12] : memref<40xf32, #tpu.memory_space<smem>>
    %17 = vector.broadcast %16 : f32 to vector<3x128xf32>
    %18 = arith.mulf %15, %17 : vector<3x128xf32>
    %19 = arith.addf %13, %18 : vector<3x128xf32>
    %c0_13 = arith.constant 0 : index
    %c3 = arith.constant 3 : index
    %c0_14 = arith.constant 0 : index
    %c0_15 = arith.constant 0 : index
    %20 = vector.load %arg4[%c0_13, %c3, %c0_14, %c0_15] : memref<1x5x3x128xf32, #tpu.memory_space<vmem>>, vector<1x1x3x128xf32>
    %21 = vector.shape_cast %20 : vector<1x1x3x128xf32> to vector<3x128xf32>
    %c3_16 = arith.constant 3 : index
    %22 = memref.load %arg2[%c3_16] : memref<40xf32, #tpu.memory_space<smem>>
    %23 = vector.broadcast %22 : f32 to vector<3x128xf32>
    %24 = arith.mulf %21, %23 : vector<3x128xf32>
    %25 = arith.addf %19, %24 : vector<3x128xf32>
    %c0_17 = arith.constant 0 : index
    %c4 = arith.constant 4 : index
    %c0_18 = arith.constant 0 : index
    %c0_19 = arith.constant 0 : index
    %26 = vector.load %arg4[%c0_17, %c4, %c0_18, %c0_19] : memref<1x5x3x128xf32, #tpu.memory_space<vmem>>, vector<1x1x3x128xf32>
    %27 = vector.shape_cast %26 : vector<1x1x3x128xf32> to vector<3x128xf32>
    %c4_20 = arith.constant 4 : index
    %28 = memref.load %arg2[%c4_20] : memref<40xf32, #tpu.memory_space<smem>>
    %29 = vector.broadcast %28 : f32 to vector<3x128xf32>
    %30 = arith.mulf %27, %29 : vector<3x128xf32>
    %31 = arith.addf %25, %30 : vector<3x128xf32>
    %cst = arith.constant 0.000000e+00 : f32
    %cst_21 = arith.constant 1.000000e+00 : f32
    %32 = vector.broadcast %cst : f32 to vector<3x128xf32>
    %33 = arith.maximumf %32, %31 : vector<3x128xf32>
    %34 = vector.broadcast %cst_21 : f32 to vector<3x128xf32>
    %35 = arith.minimumf %34, %33 : vector<3x128xf32>
    %c0_22 = arith.constant 0 : index
    %c0_23 = arith.constant 0 : index
    %c0_24 = arith.constant 0 : index
    %c0_25 = arith.constant 0 : index
    %36 = vector.load %arg5[%c0_22, %c0_23, %c0_24, %c0_25] : memref<1x8x3x128xf32, #tpu.memory_space<vmem>>, vector<1x1x3x128xf32>
    %37 = vector.shape_cast %36 : vector<1x1x3x128xf32> to vector<3x128xf32>
    %38 = vector.shape_cast %35 : vector<3x128xf32> to vector<1x1x3x128xf32>
    tpu.vector_store %arg5[%c0_22, %c0_23, %c0_24, %c0_25], %38 {strides = array<i32>} : memref<1x8x3x128xf32, #tpu.memory_space<vmem>>, vector<1x1x3x128xf32>,
    %c0_26 = arith.constant 0 : index
    %c0_27 = arith.constant 0 : index
    %c0_28 = arith.constant 0 : index
    %c0_29 = arith.constant 0 : index
    %39 = vector.load %arg4[%c0_26, %c0_27, %c0_28, %c0_29] : memref<1x5x3x128xf32, #tpu.memory_space<vmem>>, vector<1x1x3x128xf32>
    %40 = vector.shape_cast %39 : vector<1x1x3x128xf32> to vector<3x128xf32>
    %c5 = arith.constant 5 : index
    %41 = memref.load %arg2[%c5] : memref<40xf32, #tpu.memory_space<smem>>
    %42 = vector.broadcast %41 : f32 to vector<3x128xf32>
    %43 = arith.mulf %40, %42 : vector<3x128xf32>
    %c1_30 = arith.constant 1 : index
    %44 = memref.load %arg3[%c1_30] : memref<8xf32, #tpu.memory_space<smem>>
    %45 = vector.broadcast %44 : f32 to vector<3x128xf32>
    %46 = arith.addf %43, %45 : vector<3x128xf32>
    %c0_31 = arith.constant 0 : index
    %c1_32 = arith.constant 1 : index
    %c0_33 = arith.constant 0 : index
    %c0_34 = arith.constant 0 : index
    %47 = vector.load %arg4[%c0_31, %c1_32, %c0_33, %c0_34] : memref<1x5x3x128xf32, #tpu.memory_space<vmem>>, vector<1x1x3x128xf32>
    %48 = vector.shape_cast %47 : vector<1x1x3x128xf32> to vector<3x128xf32>
    %c6 = arith.constant 6 : index
    %49 = memref.load %arg2[%c6] : memref<40xf32, #tpu.memory_space<smem>>
    %50 = vector.broadcast %49 : f32 to vector<3x128xf32>
    %51 = arith.mulf %48, %50 : vector<3x128xf32>
    %52 = arith.addf %46, %51 : vector<3x128xf32>
    %c0_35 = arith.constant 0 : index
    %c2_36 = arith.constant 2 : index
    %c0_37 = arith.constant 0 : index
    %c0_38 = arith.constant 0 : index
    %53 = vector.load %arg4[%c0_35, %c2_36, %c0_37, %c0_38] : memref<1x5x3x128xf32, #tpu.memory_space<vmem>>, vector<1x1x3x128xf32>
    %54 = vector.shape_cast %53 : vector<1x1x3x128xf32> to vector<3x128xf32>
    %c7 = arith.constant 7 : index
    %55 = memref.load %arg2[%c7] : memref<40xf32, #tpu.memory_space<smem>>
    %56 = vector.broadcast %55 : f32 to vector<3x128xf32>
    %57 = arith.mulf %54, %56 : vector<3x128xf32>
    %58 = arith.addf %52, %57 : vector<3x128xf32>
    %c0_39 = arith.constant 0 : index
    %c3_40 = arith.constant 3 : index
    %c0_41 = arith.constant 0 : index
    %c0_42 = arith.constant 0 : index
    %59 = vector.load %arg4[%c0_39, %c3_40, %c0_41, %c0_42] : memref<1x5x3x128xf32, #tpu.memory_space<vmem>>, vector<1x1x3x128xf32>
    %60 = vector.shape_cast %59 : vector<1x1x3x128xf32> to vector<3x128xf32>
    %c8 = arith.constant 8 : index
    %61 = memref.load %arg2[%c8] : memref<40xf32, #tpu.memory_space<smem>>
    %62 = vector.broadcast %61 : f32 to vector<3x128xf32>
    %63 = arith.mulf %60, %62 : vector<3x128xf32>
    %64 = arith.addf %58, %63 : vector<3x128xf32>
    %c0_43 = arith.constant 0 : index
    %c4_44 = arith.constant 4 : index
    %c0_45 = arith.constant 0 : index
    %c0_46 = arith.constant 0 : index
    %65 = vector.load %arg4[%c0_43, %c4_44, %c0_45, %c0_46] : memref<1x5x3x128xf32, #tpu.memory_space<vmem>>, vector<1x1x3x128xf32>
    %66 = vector.shape_cast %65 : vector<1x1x3x128xf32> to vector<3x128xf32>
    %c9 = arith.constant 9 : index
    %67 = memref.load %arg2[%c9] : memref<40xf32, #tpu.memory_space<smem>>
    %68 = vector.broadcast %67 : f32 to vector<3x128xf32>
    %69 = arith.mulf %66, %68 : vector<3x128xf32>
    %70 = arith.addf %64, %69 : vector<3x128xf32>
    %cst_47 = arith.constant 0.000000e+00 : f32
    %cst_48 = arith.constant 1.000000e+00 : f32
    %71 = vector.broadcast %cst_47 : f32 to vector<3x128xf32>
    %72 = arith.maximumf %71, %70 : vector<3x128xf32>
    %73 = vector.broadcast %cst_48 : f32 to vector<3x128xf32>
    %74 = arith.minimumf %73, %72 : vector<3x128xf32>
    %c0_49 = arith.constant 0 : index
    %c1_50 = arith.constant 1 : index
    %c0_51 = arith.constant 0 : index
    %c0_52 = arith.constant 0 : index
    %75 = vector.load %arg5[%c0_49, %c1_50, %c0_51, %c0_52] : memref<1x8x3x128xf32, #tpu.memory_space<vmem>>, vector<1x1x3x128xf32>
    %76 = vector.shape_cast %75 : vector<1x1x3x128xf32> to vector<3x128xf32>
    %77 = vector.shape_cast %74 : vector<3x128xf32> to vector<1x1x3x128xf32>
    tpu.vector_store %arg5[%c0_49, %c1_50, %c0_51, %c0_52], %77 {strides = array<i32>} : memref<1x8x3x128xf32, #tpu.memory_space<vmem>>, vector<1x1x3x128xf32>,
    %c0_53 = arith.constant 0 : index
    %c0_54 = arith.constant 0 : index
    %c0_55 = arith.constant 0 : index
    %c0_56 = arith.constant 0 : index
    %78 = vector.load %arg4[%c0_53, %c0_54, %c0_55, %c0_56] : memref<1x5x3x128xf32, #tpu.memory_space<vmem>>, vector<1x1x3x128xf32>
    %79 = vector.shape_cast %78 : vector<1x1x3x128xf32> to vector<3x128xf32>
    %c10 = arith.constant 10 : index
    %80 = memref.load %arg2[%c10] : memref<40xf32, #tpu.memory_space<smem>>
    %81 = vector.broadcast %80 : f32 to vector<3x128xf32>
    %82 = arith.mulf %79, %81 : vector<3x128xf32>
    %c2_57 = arith.constant 2 : index
    %83 = memref.load %arg3[%c2_57] : memref<8xf32, #tpu.memory_space<smem>>
    %84 = vector.broadcast %83 : f32 to vector<3x128xf32>
    %85 = arith.addf %82, %84 : vector<3x128xf32>
    %c0_58 = arith.constant 0 : index
    %c1_59 = arith.constant 1 : index
    %c0_60 = arith.constant 0 : index
    %c0_61 = arith.constant 0 : index
    %86 = vector.load %arg4[%c0_58, %c1_59, %c0_60, %c0_61] : memref<1x5x3x128xf32, #tpu.memory_space<vmem>>, vector<1x1x3x128xf32>
    %87 = vector.shape_cast %86 : vector<1x1x3x128xf32> to vector<3x128xf32>
    %c11 = arith.constant 11 : index
    %88 = memref.load %arg2[%c11] : memref<40xf32, #tpu.memory_space<smem>>
    %89 = vector.broadcast %88 : f32 to vector<3x128xf32>
    %90 = arith.mulf %87, %89 : vector<3x128xf32>
    %91 = arith.addf %85, %90 : vector<3x128xf32>
    %c0_62 = arith.constant 0 : index
    %c2_63 = arith.constant 2 : index
    %c0_64 = arith.constant 0 : index
    %c0_65 = arith.constant 0 : index
    %92 = vector.load %arg4[%c0_62, %c2_63, %c0_64, %c0_65] : memref<1x5x3x128xf32, #tpu.memory_space<vmem>>, vector<1x1x3x128xf32>
    %93 = vector.shape_cast %92 : vector<1x1x3x128xf32> to vector<3x128xf32>
    %c12 = arith.constant 12 : index
    %94 = memref.load %arg2[%c12] : memref<40xf32, #tpu.memory_space<smem>>
    %95 = vector.broadcast %94 : f32 to vector<3x128xf32>
    %96 = arith.mulf %93, %95 : vector<3x128xf32>
    %97 = arith.addf %91, %96 : vector<3x128xf32>
    %c0_66 = arith.constant 0 : index
    %c3_67 = arith.constant 3 : index
    %c0_68 = arith.constant 0 : index
    %c0_69 = arith.constant 0 : index
    %98 = vector.load %arg4[%c0_66, %c3_67, %c0_68, %c0_69] : memref<1x5x3x128xf32, #tpu.memory_space<vmem>>, vector<1x1x3x128xf32>
    %99 = vector.shape_cast %98 : vector<1x1x3x128xf32> to vector<3x128xf32>
    %c13 = arith.constant 13 : index
    %100 = memref.load %arg2[%c13] : memref<40xf32, #tpu.memory_space<smem>>
    %101 = vector.broadcast %100 : f32 to vector<3x128xf32>
    %102 = arith.mulf %99, %101 : vector<3x128xf32>
    %103 = arith.addf %97, %102 : vector<3x128xf32>
    %c0_70 = arith.constant 0 : index
    %c4_71 = arith.constant 4 : index
    %c0_72 = arith.constant 0 : index
    %c0_73 = arith.constant 0 : index
    %104 = vector.load %arg4[%c0_70, %c4_71, %c0_72, %c0_73] : memref<1x5x3x128xf32, #tpu.memory_space<vmem>>, vector<1x1x3x128xf32>
    %105 = vector.shape_cast %104 : vector<1x1x3x128xf32> to vector<3x128xf32>
    %c14 = arith.constant 14 : index
    %106 = memref.load %arg2[%c14] : memref<40xf32, #tpu.memory_space<smem>>
    %107 = vector.broadcast %106 : f32 to vector<3x128xf32>
    %108 = arith.mulf %105, %107 : vector<3x128xf32>
    %109 = arith.addf %103, %108 : vector<3x128xf32>
    %cst_74 = arith.constant 0.000000e+00 : f32
    %cst_75 = arith.constant 1.000000e+00 : f32
    %110 = vector.broadcast %cst_74 : f32 to vector<3x128xf32>
    %111 = arith.maximumf %110, %109 : vector<3x128xf32>
    %112 = vector.broadcast %cst_75 : f32 to vector<3x128xf32>
    %113 = arith.minimumf %112, %111 : vector<3x128xf32>
    %c0_76 = arith.constant 0 : index
    %c2_77 = arith.constant 2 : index
    %c0_78 = arith.constant 0 : index
    %c0_79 = arith.constant 0 : index
    %114 = vector.load %arg5[%c0_76, %c2_77, %c0_78, %c0_79] : memref<1x8x3x128xf32, #tpu.memory_space<vmem>>, vector<1x1x3x128xf32>
    %115 = vector.shape_cast %114 : vector<1x1x3x128xf32> to vector<3x128xf32>
    %116 = vector.shape_cast %113 : vector<3x128xf32> to vector<1x1x3x128xf32>
    tpu.vector_store %arg5[%c0_76, %c2_77, %c0_78, %c0_79], %116 {strides = array<i32>} : memref<1x8x3x128xf32, #tpu.memory_space<vmem>>, vector<1x1x3x128xf32>,
    %c0_80 = arith.constant 0 : index
    %c0_81 = arith.constant 0 : index
    %c0_82 = arith.constant 0 : index
    %c0_83 = arith.constant 0 : index
    %117 = vector.load %arg4[%c0_80, %c0_81, %c0_82, %c0_83] : memref<1x5x3x128xf32, #tpu.memory_space<vmem>>, vector<1x1x3x128xf32>
    %118 = vector.shape_cast %117 : vector<1x1x3x128xf32> to vector<3x128xf32>
    %c15 = arith.constant 15 : index
    %119 = memref.load %arg2[%c15] : memref<40xf32, #tpu.memory_space<smem>>
    %120 = vector.broadcast %119 : f32 to vector<3x128xf32>
    %121 = arith.mulf %118, %120 : vector<3x128xf32>
    %c3_84 = arith.constant 3 : index
    %122 = memref.load %arg3[%c3_84] : memref<8xf32, #tpu.memory_space<smem>>
    %123 = vector.broadcast %122 : f32 to vector<3x128xf32>
    %124 = arith.addf %121, %123 : vector<3x128xf32>
    %c0_85 = arith.constant 0 : index
    %c1_86 = arith.constant 1 : index
    %c0_87 = arith.constant 0 : index
    %c0_88 = arith.constant 0 : index
    %125 = vector.load %arg4[%c0_85, %c1_86, %c0_87, %c0_88] : memref<1x5x3x128xf32, #tpu.memory_space<vmem>>, vector<1x1x3x128xf32>
    %126 = vector.shape_cast %125 : vector<1x1x3x128xf32> to vector<3x128xf32>
    %c16 = arith.constant 16 : index
    %127 = memref.load %arg2[%c16] : memref<40xf32, #tpu.memory_space<smem>>
    %128 = vector.broadcast %127 : f32 to vector<3x128xf32>
    %129 = arith.mulf %126, %128 : vector<3x128xf32>
    %130 = arith.addf %124, %129 : vector<3x128xf32>
    %c0_89 = arith.constant 0 : index
    %c2_90 = arith.constant 2 : index
    %c0_91 = arith.constant 0 : index
    %c0_92 = arith.constant 0 : index
    %131 = vector.load %arg4[%c0_89, %c2_90, %c0_91, %c0_92] : memref<1x5x3x128xf32, #tpu.memory_space<vmem>>, vector<1x1x3x128xf32>
    %132 = vector.shape_cast %131 : vector<1x1x3x128xf32> to vector<3x128xf32>
    %c17 = arith.constant 17 : index
    %133 = memref.load %arg2[%c17] : memref<40xf32, #tpu.memory_space<smem>>
    %134 = vector.broadcast %133 : f32 to vector<3x128xf32>
    %135 = arith.mulf %132, %134 : vector<3x128xf32>
    %136 = arith.addf %130, %135 : vector<3x128xf32>
    %c0_93 = arith.constant 0 : index
    %c3_94 = arith.constant 3 : index
    %c0_95 = arith.constant 0 : index
    %c0_96 = arith.constant 0 : index
    %137 = vector.load %arg4[%c0_93, %c3_94, %c0_95, %c0_96] : memref<1x5x3x128xf32, #tpu.memory_space<vmem>>, vector<1x1x3x128xf32>
    %138 = vector.shape_cast %137 : vector<1x1x3x128xf32> to vector<3x128xf32>
    %c18 = arith.constant 18 : index
    %139 = memref.load %arg2[%c18] : memref<40xf32, #tpu.memory_space<smem>>
    %140 = vector.broadcast %139 : f32 to vector<3x128xf32>
    %141 = arith.mulf %138, %140 : vector<3x128xf32>
    %142 = arith.addf %136, %141 : vector<3x128xf32>
    %c0_97 = arith.constant 0 : index
    %c4_98 = arith.constant 4 : index
    %c0_99 = arith.constant 0 : index
    %c0_100 = arith.constant 0 : index
    %143 = vector.load %arg4[%c0_97, %c4_98, %c0_99, %c0_100] : memref<1x5x3x128xf32, #tpu.memory_space<vmem>>, vector<1x1x3x128xf32>
    %144 = vector.shape_cast %143 : vector<1x1x3x128xf32> to vector<3x128xf32>
    %c19 = arith.constant 19 : index
    %145 = memref.load %arg2[%c19] : memref<40xf32, #tpu.memory_space<smem>>
    %146 = vector.broadcast %145 : f32 to vector<3x128xf32>
    %147 = arith.mulf %144, %146 : vector<3x128xf32>
    %148 = arith.addf %142, %147 : vector<3x128xf32>
    %cst_101 = arith.constant 0.000000e+00 : f32
    %cst_102 = arith.constant 1.000000e+00 : f32
    %149 = vector.broadcast %cst_101 : f32 to vector<3x128xf32>
    %150 = arith.maximumf %149, %148 : vector<3x128xf32>
    %151 = vector.broadcast %cst_102 : f32 to vector<3x128xf32>
    %152 = arith.minimumf %151, %150 : vector<3x128xf32>
    %c0_103 = arith.constant 0 : index
    %c3_104 = arith.constant 3 : index
    %c0_105 = arith.constant 0 : index
    %c0_106 = arith.constant 0 : index
    %153 = vector.load %arg5[%c0_103, %c3_104, %c0_105, %c0_106] : memref<1x8x3x128xf32, #tpu.memory_space<vmem>>, vector<1x1x3x128xf32>
    %154 = vector.shape_cast %153 : vector<1x1x3x128xf32> to vector<3x128xf32>
    %155 = vector.shape_cast %152 : vector<3x128xf32> to vector<1x1x3x128xf32>
    tpu.vector_store %arg5[%c0_103, %c3_104, %c0_105, %c0_106], %155 {strides = array<i32>} : memref<1x8x3x128xf32, #tpu.memory_space<vmem>>, vector<1x1x3x128xf32>,
    %c0_107 = arith.constant 0 : index
    %c0_108 = arith.constant 0 : index
    %c0_109 = arith.constant 0 : index
    %c0_110 = arith.constant 0 : index
    %156 = vector.load %arg4[%c0_107, %c0_108, %c0_109, %c0_110] : memref<1x5x3x128xf32, #tpu.memory_space<vmem>>, vector<1x1x3x128xf32>
    %157 = vector.shape_cast %156 : vector<1x1x3x128xf32> to vector<3x128xf32>
    %c20 = arith.constant 20 : index
    %158 = memref.load %arg2[%c20] : memref<40xf32, #tpu.memory_space<smem>>
    %159 = vector.broadcast %158 : f32 to vector<3x128xf32>
    %160 = arith.mulf %157, %159 : vector<3x128xf32>
    %c4_111 = arith.constant 4 : index
    %161 = memref.load %arg3[%c4_111] : memref<8xf32, #tpu.memory_space<smem>>
    %162 = vector.broadcast %161 : f32 to vector<3x128xf32>
    %163 = arith.addf %160, %162 : vector<3x128xf32>
    %c0_112 = arith.constant 0 : index
    %c1_113 = arith.constant 1 : index
    %c0_114 = arith.constant 0 : index
    %c0_115 = arith.constant 0 : index
    %164 = vector.load %arg4[%c0_112, %c1_113, %c0_114, %c0_115] : memref<1x5x3x128xf32, #tpu.memory_space<vmem>>, vector<1x1x3x128xf32>
    %165 = vector.shape_cast %164 : vector<1x1x3x128xf32> to vector<3x128xf32>
    %c21 = arith.constant 21 : index
    %166 = memref.load %arg2[%c21] : memref<40xf32, #tpu.memory_space<smem>>
    %167 = vector.broadcast %166 : f32 to vector<3x128xf32>
    %168 = arith.mulf %165, %167 : vector<3x128xf32>
    %169 = arith.addf %163, %168 : vector<3x128xf32>
    %c0_116 = arith.constant 0 : index
    %c2_117 = arith.constant 2 : index
    %c0_118 = arith.constant 0 : index
    %c0_119 = arith.constant 0 : index
    %170 = vector.load %arg4[%c0_116, %c2_117, %c0_118, %c0_119] : memref<1x5x3x128xf32, #tpu.memory_space<vmem>>, vector<1x1x3x128xf32>
    %171 = vector.shape_cast %170 : vector<1x1x3x128xf32> to vector<3x128xf32>
    %c22 = arith.constant 22 : index
    %172 = memref.load %arg2[%c22] : memref<40xf32, #tpu.memory_space<smem>>
    %173 = vector.broadcast %172 : f32 to vector<3x128xf32>
    %174 = arith.mulf %171, %173 : vector<3x128xf32>
    %175 = arith.addf %169, %174 : vector<3x128xf32>
    %c0_120 = arith.constant 0 : index
    %c3_121 = arith.constant 3 : index
    %c0_122 = arith.constant 0 : index
    %c0_123 = arith.constant 0 : index
    %176 = vector.load %arg4[%c0_120, %c3_121, %c0_122, %c0_123] : memref<1x5x3x128xf32, #tpu.memory_space<vmem>>, vector<1x1x3x128xf32>
    %177 = vector.shape_cast %176 : vector<1x1x3x128xf32> to vector<3x128xf32>
    %c23 = arith.constant 23 : index
    %178 = memref.load %arg2[%c23] : memref<40xf32, #tpu.memory_space<smem>>
    %179 = vector.broadcast %178 : f32 to vector<3x128xf32>
    %180 = arith.mulf %177, %179 : vector<3x128xf32>
    %181 = arith.addf %175, %180 : vector<3x128xf32>
    %c0_124 = arith.constant 0 : index
    %c4_125 = arith.constant 4 : index
    %c0_126 = arith.constant 0 : index
    %c0_127 = arith.constant 0 : index
    %182 = vector.load %arg4[%c0_124, %c4_125, %c0_126, %c0_127] : memref<1x5x3x128xf32, #tpu.memory_space<vmem>>, vector<1x1x3x128xf32>
    %183 = vector.shape_cast %182 : vector<1x1x3x128xf32> to vector<3x128xf32>
    %c24 = arith.constant 24 : index
    %184 = memref.load %arg2[%c24] : memref<40xf32, #tpu.memory_space<smem>>
    %185 = vector.broadcast %184 : f32 to vector<3x128xf32>
    %186 = arith.mulf %183, %185 : vector<3x128xf32>
    %187 = arith.addf %181, %186 : vector<3x128xf32>
    %cst_128 = arith.constant 0.000000e+00 : f32
    %cst_129 = arith.constant 1.000000e+00 : f32
    %188 = vector.broadcast %cst_128 : f32 to vector<3x128xf32>
    %189 = arith.maximumf %188, %187 : vector<3x128xf32>
    %190 = vector.broadcast %cst_129 : f32 to vector<3x128xf32>
    %191 = arith.minimumf %190, %189 : vector<3x128xf32>
    %c0_130 = arith.constant 0 : index
    %c4_131 = arith.constant 4 : index
    %c0_132 = arith.constant 0 : index
    %c0_133 = arith.constant 0 : index
    %192 = vector.load %arg5[%c0_130, %c4_131, %c0_132, %c0_133] : memref<1x8x3x128xf32, #tpu.memory_space<vmem>>, vector<1x1x3x128xf32>
    %193 = vector.shape_cast %192 : vector<1x1x3x128xf32> to vector<3x128xf32>
    %194 = vector.shape_cast %191 : vector<3x128xf32> to vector<1x1x3x128xf32>
    tpu.vector_store %arg5[%c0_130, %c4_131, %c0_132, %c0_133], %194 {strides = array<i32>} : memref<1x8x3x128xf32, #tpu.memory_space<vmem>>, vector<1x1x3x128xf32>,
    %c0_134 = arith.constant 0 : index
    %c0_135 = arith.constant 0 : index
    %c0_136 = arith.constant 0 : index
    %c0_137 = arith.constant 0 : index
    %195 = vector.load %arg4[%c0_134, %c0_135, %c0_136, %c0_137] : memref<1x5x3x128xf32, #tpu.memory_space<vmem>>, vector<1x1x3x128xf32>
    %196 = vector.shape_cast %195 : vector<1x1x3x128xf32> to vector<3x128xf32>
    %c25 = arith.constant 25 : index
    %197 = memref.load %arg2[%c25] : memref<40xf32, #tpu.memory_space<smem>>
    %198 = vector.broadcast %197 : f32 to vector<3x128xf32>
    %199 = arith.mulf %196, %198 : vector<3x128xf32>
    %c5_138 = arith.constant 5 : index
    %200 = memref.load %arg3[%c5_138] : memref<8xf32, #tpu.memory_space<smem>>
    %201 = vector.broadcast %200 : f32 to vector<3x128xf32>
    %202 = arith.addf %199, %201 : vector<3x128xf32>
    %c0_139 = arith.constant 0 : index
    %c1_140 = arith.constant 1 : index
    %c0_141 = arith.constant 0 : index
    %c0_142 = arith.constant 0 : index
    %203 = vector.load %arg4[%c0_139, %c1_140, %c0_141, %c0_142] : memref<1x5x3x128xf32, #tpu.memory_space<vmem>>, vector<1x1x3x128xf32>
    %204 = vector.shape_cast %203 : vector<1x1x3x128xf32> to vector<3x128xf32>
    %c26 = arith.constant 26 : index
    %205 = memref.load %arg2[%c26] : memref<40xf32, #tpu.memory_space<smem>>
    %206 = vector.broadcast %205 : f32 to vector<3x128xf32>
    %207 = arith.mulf %204, %206 : vector<3x128xf32>
    %208 = arith.addf %202, %207 : vector<3x128xf32>
    %c0_143 = arith.constant 0 : index
    %c2_144 = arith.constant 2 : index
    %c0_145 = arith.constant 0 : index
    %c0_146 = arith.constant 0 : index
    %209 = vector.load %arg4[%c0_143, %c2_144, %c0_145, %c0_146] : memref<1x5x3x128xf32, #tpu.memory_space<vmem>>, vector<1x1x3x128xf32>
    %210 = vector.shape_cast %209 : vector<1x1x3x128xf32> to vector<3x128xf32>
    %c27 = arith.constant 27 : index
    %211 = memref.load %arg2[%c27] : memref<40xf32, #tpu.memory_space<smem>>
    %212 = vector.broadcast %211 : f32 to vector<3x128xf32>
    %213 = arith.mulf %210, %212 : vector<3x128xf32>
    %214 = arith.addf %208, %213 : vector<3x128xf32>
    %c0_147 = arith.constant 0 : index
    %c3_148 = arith.constant 3 : index
    %c0_149 = arith.constant 0 : index
    %c0_150 = arith.constant 0 : index
    %215 = vector.load %arg4[%c0_147, %c3_148, %c0_149, %c0_150] : memref<1x5x3x128xf32, #tpu.memory_space<vmem>>, vector<1x1x3x128xf32>
    %216 = vector.shape_cast %215 : vector<1x1x3x128xf32> to vector<3x128xf32>
    %c28 = arith.constant 28 : index
    %217 = memref.load %arg2[%c28] : memref<40xf32, #tpu.memory_space<smem>>
    %218 = vector.broadcast %217 : f32 to vector<3x128xf32>
    %219 = arith.mulf %216, %218 : vector<3x128xf32>
    %220 = arith.addf %214, %219 : vector<3x128xf32>
    %c0_151 = arith.constant 0 : index
    %c4_152 = arith.constant 4 : index
    %c0_153 = arith.constant 0 : index
    %c0_154 = arith.constant 0 : index
    %221 = vector.load %arg4[%c0_151, %c4_152, %c0_153, %c0_154] : memref<1x5x3x128xf32, #tpu.memory_space<vmem>>, vector<1x1x3x128xf32>
    %222 = vector.shape_cast %221 : vector<1x1x3x128xf32> to vector<3x128xf32>
    %c29 = arith.constant 29 : index
    %223 = memref.load %arg2[%c29] : memref<40xf32, #tpu.memory_space<smem>>
    %224 = vector.broadcast %223 : f32 to vector<3x128xf32>
    %225 = arith.mulf %222, %224 : vector<3x128xf32>
    %226 = arith.addf %220, %225 : vector<3x128xf32>
    %cst_155 = arith.constant 0.000000e+00 : f32
    %cst_156 = arith.constant 1.000000e+00 : f32
    %227 = vector.broadcast %cst_155 : f32 to vector<3x128xf32>
    %228 = arith.maximumf %227, %226 : vector<3x128xf32>
    %229 = vector.broadcast %cst_156 : f32 to vector<3x128xf32>
    %230 = arith.minimumf %229, %228 : vector<3x128xf32>
    %c0_157 = arith.constant 0 : index
    %c5_158 = arith.constant 5 : index
    %c0_159 = arith.constant 0 : index
    %c0_160 = arith.constant 0 : index
    %231 = vector.load %arg5[%c0_157, %c5_158, %c0_159, %c0_160] : memref<1x8x3x128xf32, #tpu.memory_space<vmem>>, vector<1x1x3x128xf32>
    %232 = vector.shape_cast %231 : vector<1x1x3x128xf32> to vector<3x128xf32>
    %233 = vector.shape_cast %230 : vector<3x128xf32> to vector<1x1x3x128xf32>
    tpu.vector_store %arg5[%c0_157, %c5_158, %c0_159, %c0_160], %233 {strides = array<i32>} : memref<1x8x3x128xf32, #tpu.memory_space<vmem>>, vector<1x1x3x128xf32>,
    %c0_161 = arith.constant 0 : index
    %c0_162 = arith.constant 0 : index
    %c0_163 = arith.constant 0 : index
    %c0_164 = arith.constant 0 : index
    %234 = vector.load %arg4[%c0_161, %c0_162, %c0_163, %c0_164] : memref<1x5x3x128xf32, #tpu.memory_space<vmem>>, vector<1x1x3x128xf32>
    %235 = vector.shape_cast %234 : vector<1x1x3x128xf32> to vector<3x128xf32>
    %c30 = arith.constant 30 : index
    %236 = memref.load %arg2[%c30] : memref<40xf32, #tpu.memory_space<smem>>
    %237 = vector.broadcast %236 : f32 to vector<3x128xf32>
    %238 = arith.mulf %235, %237 : vector<3x128xf32>
    %c6_165 = arith.constant 6 : index
    %239 = memref.load %arg3[%c6_165] : memref<8xf32, #tpu.memory_space<smem>>
    %240 = vector.broadcast %239 : f32 to vector<3x128xf32>
    %241 = arith.addf %238, %240 : vector<3x128xf32>
    %c0_166 = arith.constant 0 : index
    %c1_167 = arith.constant 1 : index
    %c0_168 = arith.constant 0 : index
    %c0_169 = arith.constant 0 : index
    %242 = vector.load %arg4[%c0_166, %c1_167, %c0_168, %c0_169] : memref<1x5x3x128xf32, #tpu.memory_space<vmem>>, vector<1x1x3x128xf32>
    %243 = vector.shape_cast %242 : vector<1x1x3x128xf32> to vector<3x128xf32>
    %c31 = arith.constant 31 : index
    %244 = memref.load %arg2[%c31] : memref<40xf32, #tpu.memory_space<smem>>
    %245 = vector.broadcast %244 : f32 to vector<3x128xf32>
    %246 = arith.mulf %243, %245 : vector<3x128xf32>
    %247 = arith.addf %241, %246 : vector<3x128xf32>
    %c0_170 = arith.constant 0 : index
    %c2_171 = arith.constant 2 : index
    %c0_172 = arith.constant 0 : index
    %c0_173 = arith.constant 0 : index
    %248 = vector.load %arg4[%c0_170, %c2_171, %c0_172, %c0_173] : memref<1x5x3x128xf32, #tpu.memory_space<vmem>>, vector<1x1x3x128xf32>
    %249 = vector.shape_cast %248 : vector<1x1x3x128xf32> to vector<3x128xf32>
    %c32 = arith.constant 32 : index
    %250 = memref.load %arg2[%c32] : memref<40xf32, #tpu.memory_space<smem>>
    %251 = vector.broadcast %250 : f32 to vector<3x128xf32>
    %252 = arith.mulf %249, %251 : vector<3x128xf32>
    %253 = arith.addf %247, %252 : vector<3x128xf32>
    %c0_174 = arith.constant 0 : index
    %c3_175 = arith.constant 3 : index
    %c0_176 = arith.constant 0 : index
    %c0_177 = arith.constant 0 : index
    %254 = vector.load %arg4[%c0_174, %c3_175, %c0_176, %c0_177] : memref<1x5x3x128xf32, #tpu.memory_space<vmem>>, vector<1x1x3x128xf32>
    %255 = vector.shape_cast %254 : vector<1x1x3x128xf32> to vector<3x128xf32>
    %c33 = arith.constant 33 : index
    %256 = memref.load %arg2[%c33] : memref<40xf32, #tpu.memory_space<smem>>
    %257 = vector.broadcast %256 : f32 to vector<3x128xf32>
    %258 = arith.mulf %255, %257 : vector<3x128xf32>
    %259 = arith.addf %253, %258 : vector<3x128xf32>
    %c0_178 = arith.constant 0 : index
    %c4_179 = arith.constant 4 : index
    %c0_180 = arith.constant 0 : index
    %c0_181 = arith.constant 0 : index
    %260 = vector.load %arg4[%c0_178, %c4_179, %c0_180, %c0_181] : memref<1x5x3x128xf32, #tpu.memory_space<vmem>>, vector<1x1x3x128xf32>
    %261 = vector.shape_cast %260 : vector<1x1x3x128xf32> to vector<3x128xf32>
    %c34 = arith.constant 34 : index
    %262 = memref.load %arg2[%c34] : memref<40xf32, #tpu.memory_space<smem>>
    %263 = vector.broadcast %262 : f32 to vector<3x128xf32>
    %264 = arith.mulf %261, %263 : vector<3x128xf32>
    %265 = arith.addf %259, %264 : vector<3x128xf32>
    %cst_182 = arith.constant 0.000000e+00 : f32
    %cst_183 = arith.constant 1.000000e+00 : f32
    %266 = vector.broadcast %cst_182 : f32 to vector<3x128xf32>
    %267 = arith.maximumf %266, %265 : vector<3x128xf32>
    %268 = vector.broadcast %cst_183 : f32 to vector<3x128xf32>
    %269 = arith.minimumf %268, %267 : vector<3x128xf32>
    %c0_184 = arith.constant 0 : index
    %c6_185 = arith.constant 6 : index
    %c0_186 = arith.constant 0 : index
    %c0_187 = arith.constant 0 : index
    %270 = vector.load %arg5[%c0_184, %c6_185, %c0_186, %c0_187] : memref<1x8x3x128xf32, #tpu.memory_space<vmem>>, vector<1x1x3x128xf32>
    %271 = vector.shape_cast %270 : vector<1x1x3x128xf32> to vector<3x128xf32>
    %272 = vector.shape_cast %269 : vector<3x128xf32> to vector<1x1x3x128xf32>
    tpu.vector_store %arg5[%c0_184, %c6_185, %c0_186, %c0_187], %272 {strides = array<i32>} : memref<1x8x3x128xf32, #tpu.memory_space<vmem>>, vector<1x1x3x128xf32>,
    %c0_188 = arith.constant 0 : index
    %c0_189 = arith.constant 0 : index
    %c0_190 = arith.constant 0 : index
    %c0_191 = arith.constant 0 : index
    %273 = vector.load %arg4[%c0_188, %c0_189, %c0_190, %c0_191] : memref<1x5x3x128xf32, #tpu.memory_space<vmem>>, vector<1x1x3x128xf32>
    %274 = vector.shape_cast %273 : vector<1x1x3x128xf32> to vector<3x128xf32>
    %c35 = arith.constant 35 : index
    %275 = memref.load %arg2[%c35] : memref<40xf32, #tpu.memory_space<smem>>
    %276 = vector.broadcast %275 : f32 to vector<3x128xf32>
    %277 = arith.mulf %274, %276 : vector<3x128xf32>
    %c7_192 = arith.constant 7 : index
    %278 = memref.load %arg3[%c7_192] : memref<8xf32, #tpu.memory_space<smem>>
    %279 = vector.broadcast %278 : f32 to vector<3x128xf32>
    %280 = arith.addf %277, %279 : vector<3x128xf32>
    %c0_193 = arith.constant 0 : index
    %c1_194 = arith.constant 1 : index
    %c0_195 = arith.constant 0 : index
    %c0_196 = arith.constant 0 : index
    %281 = vector.load %arg4[%c0_193, %c1_194, %c0_195, %c0_196] : memref<1x5x3x128xf32, #tpu.memory_space<vmem>>, vector<1x1x3x128xf32>
    %282 = vector.shape_cast %281 : vector<1x1x3x128xf32> to vector<3x128xf32>
    %c36 = arith.constant 36 : index
    %283 = memref.load %arg2[%c36] : memref<40xf32, #tpu.memory_space<smem>>
    %284 = vector.broadcast %283 : f32 to vector<3x128xf32>
    %285 = arith.mulf %282, %284 : vector<3x128xf32>
    %286 = arith.addf %280, %285 : vector<3x128xf32>
    %c0_197 = arith.constant 0 : index
    %c2_198 = arith.constant 2 : index
    %c0_199 = arith.constant 0 : index
    %c0_200 = arith.constant 0 : index
    %287 = vector.load %arg4[%c0_197, %c2_198, %c0_199, %c0_200] : memref<1x5x3x128xf32, #tpu.memory_space<vmem>>, vector<1x1x3x128xf32>
    %288 = vector.shape_cast %287 : vector<1x1x3x128xf32> to vector<3x128xf32>
    %c37 = arith.constant 37 : index
    %289 = memref.load %arg2[%c37] : memref<40xf32, #tpu.memory_space<smem>>
    %290 = vector.broadcast %289 : f32 to vector<3x128xf32>
    %291 = arith.mulf %288, %290 : vector<3x128xf32>
    %292 = arith.addf %286, %291 : vector<3x128xf32>
    %c0_201 = arith.constant 0 : index
    %c3_202 = arith.constant 3 : index
    %c0_203 = arith.constant 0 : index
    %c0_204 = arith.constant 0 : index
    %293 = vector.load %arg4[%c0_201, %c3_202, %c0_203, %c0_204] : memref<1x5x3x128xf32, #tpu.memory_space<vmem>>, vector<1x1x3x128xf32>
    %294 = vector.shape_cast %293 : vector<1x1x3x128xf32> to vector<3x128xf32>
    %c38 = arith.constant 38 : index
    %295 = memref.load %arg2[%c38] : memref<40xf32, #tpu.memory_space<smem>>
    %296 = vector.broadcast %295 : f32 to vector<3x128xf32>
    %297 = arith.mulf %294, %296 : vector<3x128xf32>
    %298 = arith.addf %292, %297 : vector<3x128xf32>
    %c0_205 = arith.constant 0 : index
    %c4_206 = arith.constant 4 : index
    %c0_207 = arith.constant 0 : index
    %c0_208 = arith.constant 0 : index
    %299 = vector.load %arg4[%c0_205, %c4_206, %c0_207, %c0_208] : memref<1x5x3x128xf32, #tpu.memory_space<vmem>>, vector<1x1x3x128xf32>
    %300 = vector.shape_cast %299 : vector<1x1x3x128xf32> to vector<3x128xf32>
    %c39 = arith.constant 39 : index
    %301 = memref.load %arg2[%c39] : memref<40xf32, #tpu.memory_space<smem>>
    %302 = vector.broadcast %301 : f32 to vector<3x128xf32>
    %303 = arith.mulf %300, %302 : vector<3x128xf32>
    %304 = arith.addf %298, %303 : vector<3x128xf32>
    %cst_209 = arith.constant 0.000000e+00 : f32
    %cst_210 = arith.constant 1.000000e+00 : f32
    %305 = vector.broadcast %cst_209 : f32 to vector<3x128xf32>
    %306 = arith.maximumf %305, %304 : vector<3x128xf32>
    %307 = vector.broadcast %cst_210 : f32 to vector<3x128xf32>
    %308 = arith.minimumf %307, %306 : vector<3x128xf32>
    %c0_211 = arith.constant 0 : index
    %c7_212 = arith.constant 7 : index
    %c0_213 = arith.constant 0 : index
    %c0_214 = arith.constant 0 : index
    %309 = vector.load %arg5[%c0_211, %c7_212, %c0_213, %c0_214] : memref<1x8x3x128xf32, #tpu.memory_space<vmem>>, vector<1x1x3x128xf32>
    %310 = vector.shape_cast %309 : vector<1x1x3x128xf32> to vector<3x128xf32>
    %311 = vector.shape_cast %308 : vector<3x128xf32> to vector<1x1x3x128xf32>
    tpu.vector_store %arg5[%c0_211, %c7_212, %c0_213, %c0_214], %311 {strides = array<i32>} : memref<1x8x3x128xf32, #tpu.memory_space<vmem>>, vector<1x1x3x128xf32>,
    return
  }
  func.func @transform_0(%arg0: i32, %arg1: i32) -> i32 {
    %c0_i32 = arith.constant 0 : i32
    %c0_i32_0 = arith.constant 0 : i32
    return %c0_i32 : i32
  }
  func.func @transform_1(%arg0: i32, %arg1: i32) -> i32 {
    %c0_i32 = arith.constant 0 : i32
    %c0_i32_0 = arith.constant 0 : i32
    return %c0_i32 : i32
  }
  func.func @transform_2(%arg0: i32, %arg1: i32) -> (i32, i32, i32, i32) {
    %c0_i32 = arith.constant 0 : i32
    %c0_i32_0 = arith.constant 0 : i32
    %c0_i32_1 = arith.constant 0 : i32
    return %arg0, %c0_i32, %arg1, %c0_i32_0 : i32, i32, i32, i32
  }
  func.func @transform_3(%arg0: i32, %arg1: i32) -> (i32, i32, i32, i32) {
    %c0_i32 = arith.constant 0 : i32
    %c0_i32_0 = arith.constant 0 : i32
    %c0_i32_1 = arith.constant 0 : i32
    return %arg0, %c0_i32, %arg1, %c0_i32_0 : i32, i32, i32, i32
  }
}

</mosaic_0001>

<llo_original>
// kernel: conv1x1_pad1_hardsig.1
$region0: #{conv1x1_pad1_hardsig.1}
  #allocation0 [shape = 'u32[]', space=smem, size = 0x4, offset = 0x4, fixed_abs, tag = 'smem constant byte address 0x4 - core index']
  #allocation1 [shape = 'u32[144,128]{1,0:T(1,128)}', space=vmem, size = 0x12000, scoped, tag = 'internal scratch']
  %s0 = inlined_call_operand.vmem [shape: f32[40], index: 0, kind: input, shape index: {}]
  %s1 = inlined_call_operand.vmem [shape: f32[8], index: 1, kind: input, shape index: {}]
  %s2 = inlined_call_operand.vmem [shape: f32[2,5,3,128], index: 2, kind: input, shape index: {}]
  %s3 = inlined_call_operand.vmem [shape: f32[2,8,3,128], index: 3, kind: output, shape index: {}]
  %s4 = sld [smem:[#allocation0]]
  $region53: #{conv1x1_pad1_hardsig.1} parent=0
    _
  %s6 = ssub.s32 1, %s4
  %s7 = scalar_select 0, %s6, %s4
  $region1: #{conv1x1_pad1_hardsig.1} parent=0
    #allocation2 [shape = 'u8[512]{0}', space=smem, size = 0x200, scoped, tag = 'input window, operand 0, single buffered']
    #allocation3 [shape = 's32[2]{0}', space=sflag, size = 0x8, scoped, tag = 'scoped memory for conv1x1_pad1_hardsig.1']
    #allocation4 [shape = 'u8[512]{0}', space=smem, size = 0x200, scoped, tag = 'input window, operand 1, single buffered']
    #allocation5 [shape = 's32[1]{0}', space=sflag, size = 0x4, scoped, tag = 'scoped memory for conv1x1_pad1_hardsig.1']
    %8 = vsyncpa [#allocation3], 0
    %9 = vsyncpa [#allocation5], 0
    loop: start=0, step=1, limit=4
    $region2: #{conv1x1_pad1_hardsig.1} parent=1 // loop_pre_header
      _
    $region3: #{conv1x1_pad1_hardsig.1} parent=1 // loop_header
      %s11 = sphi 0, %s15
      %p12 = scmp.ge.s32.totalorder %s11, 4
      %s18 = sphi 0, %s30
      %s19 = sphi 0, %s26
      %s20 = sphi 0, %s18
      %s21 = sphi 0, %s19
      %s22 = sphi 0, %s20
      %s23 = sphi 0, %s21
      %s31 = sphi 0, %s31
      %s33 = sphi 0, %s31
      %s34 = sphi 0, %s33
      %s48 = sphi 0, %s34
      %s52 = sphi 0, %s52
      %s54 = sphi 0, %s52
      %s55 = sphi 0, %s54
      %s69 = sphi 0, %s55
      %s77 = sphi 0, %s79
      %s80 = sphi 0, %s77
      %s81 = sphi 0, %s80
      %s97 = sphi 0, %s81
      %s105 = sphi 0, %s107
      %s108 = sphi 0, %s105
      %s109 = sphi 0, %s108
      %s125 = sphi 0, %s109
    $region4: #{conv1x1_pad1_hardsig.1} parent=1 // loop_header_branch
      %14 = sbr.rel (%p12) target = $region8
    $region5: #{conv1x1_pad1_hardsig.1} parent=1 // loop_body
      %s16 = ssub.s32 %s11, 1
      %s17 = ssub.s32 %s11, 2
      %s24 = sadd.s32 1, %s19
      %p25 = scmp.ge.s32.totalorder %s24, 1
      %s26 = scalar_select %p25, 0, %s24
      %s27 = sadd.s32 1, %s18
      %s28 = scalar_select %p25, %s27, %s18
      %p29 = scmp.ge.s32.totalorder %s28, 2
      %s30 = scalar_select %p29, 0, %s28
      %s32 = sadd.s32 %s31, 1
      %p35 = scmp.eq.s32.totalorder %s11, 1
      %p36 = scmp.ne.s32.totalorder %s31, %s33
      %p37 = scmp.eq.s32.totalorder %s11, 0
      %p38 = por %p36, %p37
      %p39 = scmp.ne.s32.totalorder %s31, %s33
      %p40 = scmp.eq.s32.totalorder %s16, 1
      %p41 = por %p39, %p40
      %p42 = scmp.ne.s32.totalorder %s33, %s34
      %p43 = scmp.eq.s32.totalorder %s16, 0
      %p44 = por %p42, %p43
      %p45 = scmp.ne.s32.totalorder %s33, %s34
      %p46 = scmp.eq.s32.totalorder %s17, 1
      %p47 = por %p45, %p46
      %p49 = scmp.ne.s32.totalorder %s34, %s48
      %p50 = scmp.eq.s32.totalorder %s17, 0
      %p51 = por %p49, %p50
      %s53 = sadd.s32 %s52, 1
      %p56 = scmp.eq.s32.totalorder %s11, 1
      %p57 = scmp.ne.s32.totalorder %s52, %s54
      %p58 = scmp.eq.s32.totalorder %s11, 0
      %p59 = por %p57, %p58
      %p60 = scmp.ne.s32.totalorder %s52, %s54
      %p61 = scmp.eq.s32.totalorder %s16, 1
      %p62 = por %p60, %p61
      %p63 = scmp.ne.s32.totalorder %s54, %s55
      %p64 = scmp.eq.s32.totalorder %s16, 0
      %p65 = por %p63, %p64
      %p66 = scmp.ne.s32.totalorder %s54, %s55
      %p67 = scmp.eq.s32.totalorder %s17, 1
      %p68 = por %p66, %p67
      %p70 = scmp.ne.s32.totalorder %s55, %s69
      %p71 = scmp.eq.s32.totalorder %s17, 0
      %p72 = por %p70, %p71
      %s73 = ssub.s32 %s18, %s30
      %s74 = ssub.s32 %s19, %s26
      %s75 = sor.u32 %s73, %s74
      %p76 = scmp.eq.s32.totalorder %s75, 0
      %s78 = sadd.s32 %s77, 1
      %s79 = scalar_select %p76, %s77, %s78
      %p82 = pneg %p76
      %p83 = scmp.eq.s32.totalorder %s11, 1
      %p84 = por %p82, %p83
      %p85 = scmp.ne.s32.totalorder %s77, %s80
      %p86 = scmp.eq.s32.totalorder %s11, 0
      %p87 = por %p85, %p86
      %p88 = scmp.ne.s32.totalorder %s77, %s80
      %p89 = scmp.eq.s32.totalorder %s16, 1
      %p90 = por %p88, %p89
      %p91 = scmp.ne.s32.totalorder %s80, %s81
      %p92 = scmp.eq.s32.totalorder %s16, 0
      %p93 = por %p91, %p92
      %p94 = scmp.ne.s32.totalorder %s80, %s81
      %p95 = scmp.eq.s32.totalorder %s17, 1
      %p96 = por %p94, %p95
      %p98 = scmp.ne.s32.totalorder %s81, %s97
      %p99 = scmp.eq.s32.totalorder %s17, 0
      %p100 = por %p98, %p99
      %s101 = ssub.s32 %s18, %s30
      %s102 = ssub.s32 %s19, %s26
      %s103 = sor.u32 %s101, %s102
      %p104 = scmp.eq.s32.totalorder %s103, 0
      %s106 = sadd.s32 %s105, 1
      %s107 = scalar_select %p104, %s105, %s106
      %p110 = pneg %p104
      %p111 = scmp.eq.s32.totalorder %s11, 1
      %p112 = por %p110, %p111
      %p113 = scmp.ne.s32.totalorder %s105, %s108
      %p114 = scmp.eq.s32.totalorder %s11, 0
      %p115 = por %p113, %p114
      %p116 = scmp.ne.s32.totalorder %s105, %s108
      %p117 = scmp.eq.s32.totalorder %s16, 1
      %p118 = por %p116, %p117
      %p119 = scmp.ne.s32.totalorder %s108, %s109
      %p120 = scmp.eq.s32.totalorder %s16, 0
      %p121 = por %p119, %p120
      %p122 = scmp.ne.s32.totalorder %s108, %s109
      %p123 = scmp.eq.s32.totalorder %s17, 1
      %p124 = por %p122, %p123
      %p126 = scmp.ne.s32.totalorder %s109, %s125
      %p127 = scmp.eq.s32.totalorder %s17, 0
      %p128 = por %p126, %p127
      %p129 = scmp.le.s32.totalorder 1, %s11
      %p130 = scmp.lt.s32.totalorder %s11, 3
      %p131 = pnand %p129, %p130
      %p132 = pneg %p131
      // Predicated region
      $region9: #{conv1x1_pad1_hardsig.1} parent=5 // pred_check
        _
      $region10: #{conv1x1_pad1_hardsig.1} parent=5 // pred_check_branch
        %134 = sbr.rel (%p131) target = $region12
      $region11: #{conv1x1_pad1_hardsig.1} parent=5 // pred_region
        %s135 = ssub.s32 %s11, 1
        // Predicated region
        $region13: #{conv1x1_pad1_hardsig.1} parent=11 // pred_check
          %p136 = pneg %p44
        $region14: #{conv1x1_pad1_hardsig.1} parent=11 // pred_check_branch
          %138 = sbr.rel (%p136) target = $region16
        $region15: #{conv1x1_pad1_hardsig.1} parent=11 // pred_region
          %s140 = ssub.s32 16, 16
          %141 = vsyncadd [#allocation3], %s140
          %s143 = sshll.u32 %s0, 4
          %s144 = int_to_ptr.vmem [resolvable:$true] %s143
          %146 = dma.vmem_to_smem %s144, 16, [#allocation2], [#allocation3]
        $region16: #{conv1x1_pad1_hardsig.1} parent=11 // pred_fallthru
          _
        // Predicated region
        $region17: #{conv1x1_pad1_hardsig.1} parent=11 // pred_check
          %p147 = pneg %p65
        $region18: #{conv1x1_pad1_hardsig.1} parent=11 // pred_check_branch
          %149 = sbr.rel (%p147) target = $region20
        $region19: #{conv1x1_pad1_hardsig.1} parent=11 // pred_region
          %s151 = ssub.s32 16, 16
          %152 = vsyncadd [#allocation5], %s151
          %s154 = sshll.u32 %s1, 4
          %s155 = int_to_ptr.vmem [resolvable:$true] %s154
          %157 = dma.vmem_to_smem %s155, 16, [#allocation4], [#allocation5]
        $region20: #{conv1x1_pad1_hardsig.1} parent=11 // pred_fallthru
          _
      $region12: #{conv1x1_pad1_hardsig.1} parent=5 // pred_fallthru
        _
      %p158 = scmp.lt.s32.totalorder %s11, 2
      // Predicated region
      $region21: #{conv1x1_pad1_hardsig.1} parent=5 // pred_check
        %p159 = pneg %p158
      $region22: #{conv1x1_pad1_hardsig.1} parent=5 // pred_check_branch
        %161 = sbr.rel (%p159) target = $region24
      $region23: #{conv1x1_pad1_hardsig.1} parent=5 // pred_region
        // Predicated region
        $region25: #{conv1x1_pad1_hardsig.1} parent=23 // pred_check
          %p162 = pneg %p87
        $region26: #{conv1x1_pad1_hardsig.1} parent=23 // pred_check_branch
          %164 = sbr.rel (%p162) target = $region28
        $region27: #{conv1x1_pad1_hardsig.1} parent=23 // pred_region
          %p165 = scmp.lt.s32.totalorder %s18, 1
          %s166 = scalar_select %p165, %s18, 1
          %p167 = scmp.lt.s32.totalorder %s19, 0
          %s168 = scalar_select %p167, %s19, 0
          %s169 = smul.addr %s166, 5
          %s170 = sadd.s32 %s168, %s169
          %s171 = smul.addr %s170, 4
          %s172 = scalar_lea.vmem %s2, %s171
        $region28: #{conv1x1_pad1_hardsig.1} parent=23 // pred_fallthru
          _
      $region24: #{conv1x1_pad1_hardsig.1} parent=5 // pred_fallthru
        _
      %p173 = scmp.le.s32.totalorder 1, %s11
      %p174 = scmp.lt.s32.totalorder %s11, 3
      %p175 = pnand %p173, %p174
      %p176 = pneg %p175
      // Predicated region
      $region29: #{conv1x1_pad1_hardsig.1} parent=5 // pred_check
        _
      $region30: #{conv1x1_pad1_hardsig.1} parent=5 // pred_check_branch
        %178 = sbr.rel (%p175) target = $region32
      $region31: #{conv1x1_pad1_hardsig.1} parent=5 // pred_region
        %s179 = ssub.s32 %s11, 1
        // Predicated region
        $region33: #{conv1x1_pad1_hardsig.1} parent=31 // pred_check
          %p180 = pneg %p44
        $region34: #{conv1x1_pad1_hardsig.1} parent=31 // pred_check_branch
          %182 = sbr.rel (%p180) target = $region36
        $region35: #{conv1x1_pad1_hardsig.1} parent=31 // pred_region
          %183 = dma.done [#allocation3], 16
        $region36: #{conv1x1_pad1_hardsig.1} parent=31 // pred_fallthru
          _
        // Predicated region
        $region37: #{conv1x1_pad1_hardsig.1} parent=31 // pred_check
          %p184 = pneg %p65
        $region38: #{conv1x1_pad1_hardsig.1} parent=31 // pred_check_branch
          %186 = sbr.rel (%p184) target = $region40
        $region39: #{conv1x1_pad1_hardsig.1} parent=31 // pred_region
          %187 = dma.done [#allocation5], 16
        $region40: #{conv1x1_pad1_hardsig.1} parent=31 // pred_fallthru
          _
        %188 = sfence
        %p189 = pneg %p44
        %p190 = pneg %p41
        %p191 = pneg %p65
        %p192 = pneg %p62
        %p193 = scmp.lt.s32.totalorder %s20, 1
        %s194 = scalar_select %p193, %s20, 1
        %p195 = scmp.lt.s32.totalorder %s21, 0
        %s196 = scalar_select %p195, %s21, 0
        %s197 = smul.addr %s194, 5
        %s198 = sadd.s32 %s196, %s197
        %s199 = smul.addr %s198, 4
        %s200 = scalar_lea.vmem %s2, %s199
        %p201 = pneg %p93
        %p202 = pneg %p90
        %p203 = pneg %p121
        %p204 = pneg %p118
        %p205 = scmp.lt.s32.totalorder %s20, 1
        %s206 = scalar_select %p205, %s20, 1
        %p207 = scmp.lt.s32.totalorder %s21, 0
        %s208 = scalar_select %p207, %s21, 0
        %s209 = smul.addr %s206, 8
        %s210 = sadd.s32 %s208, %s209
        %s211 = smul.addr %s210, 4
        %s212 = scalar_lea.vmem %s3, %s211
        %p213 = scmp.lt.s32.totalorder %s20, 1
        %s214 = scalar_select %p213, %s20, 1
        %p215 = scmp.lt.s32.totalorder %s21, 0
        %s216 = scalar_select %p215, %s21, 0
        %s217 = smul.addr %s214, 5
        %s218 = sadd.s32 %s216, %s217
        %s219 = smul.addr %s218, 4
        %s220 = scalar_lea.vmem %s2, %s219
        %p221 = scmp.lt.s32.totalorder %s20, 1
        %s222 = scalar_select %p221, %s20, 1
        %p223 = scmp.lt.s32.totalorder %s21, 0
        %s224 = scalar_select %p223, %s21, 0
        %s225 = smul.addr %s222, 8
        %s226 = sadd.s32 %s224, %s225
        %s227 = smul.addr %s226, 4
        %s228 = scalar_lea.vmem %s3, %s227
        %v229 = vld [vmem:[%s220] sm:$0x7]
        %s230 = sld [smem:[#allocation2]]
        %v231 = vstv %s230
        %v232 = vmul.f32 %v229, %v231
        %s233 = sld [smem:[#allocation4]]
        %v234 = vstv %s233
        %v235 = vadd.f32 %v232, %v234
        %s236 = scalar_lea.vmem %s220, 4
        %v237 = vld [vmem:[%s236] sm:$0x7]
        %s238 = sld [smem:[#allocation2 + $0x1]]
        %v239 = vstv %s238
        %v240 = vmul.f32 %v237, %v239
        %v241 = vadd.f32 %v235, %v240
        %s242 = scalar_lea.vmem %s220, 8
        %v243 = vld [vmem:[%s242] sm:$0x7]
        %s244 = sld [smem:[#allocation2 + $0x2]]
        %v245 = vstv %s244
        %v246 = vmul.f32 %v243, %v245
        %v247 = vadd.f32 %v241, %v246
        %s248 = scalar_lea.vmem %s220, 12
        %v249 = vld [vmem:[%s248] sm:$0x7]
        %s250 = sld [smem:[#allocation2 + $0x3]]
        %v251 = vstv %s250
        %v252 = vmul.f32 %v249, %v251
        %v253 = vadd.f32 %v247, %v252
        %s254 = scalar_lea.vmem %s220, 16
        %v255 = vld [vmem:[%s254] sm:$0x7]
        %s256 = sld [smem:[#allocation2 + $0x4]]
        %v257 = vstv %s256
        %v258 = vmul.f32 %v255, %v257
        %v259 = vadd.f32 %v253, %v258
        %v260 = vmax.f32 %v259, 0.0
        %v261 = vmin.f32 %v260, 1.0
        %262 = vst [vmem:[%s228] sm:$0x7] %v261
        %v263 = vld [vmem:[%s220] sm:$0x7]
        %s264 = sld [smem:[#allocation2 + $0x5]]
        %v265 = vstv %s264
        %v266 = vmul.f32 %v263, %v265
        %s267 = sld [smem:[#allocation4 + $0x1]]
        %v268 = vstv %s267
        %v269 = vadd.f32 %v266, %v268
        %v270 = vld [vmem:[%s236] sm:$0x7]
        %s271 = sld [smem:[#allocation2 + $0x6]]
        %v272 = vstv %s271
        %v273 = vmul.f32 %v270, %v272
        %v274 = vadd.f32 %v269, %v273
        %v275 = vld [vmem:[%s242] sm:$0x7]
        %s276 = sld [smem:[#allocation2 + $0x7]]
        %v277 = vstv %s276
        %v278 = vmul.f32 %v275, %v277
        %v279 = vadd.f32 %v274, %v278
        %v280 = vld [vmem:[%s248] sm:$0x7]
        %s281 = sld [smem:[#allocation2 + $0x8]]
        %v282 = vstv %s281
        %v283 = vmul.f32 %v280, %v282
        %v284 = vadd.f32 %v279, %v283
        %v285 = vld [vmem:[%s254] sm:$0x7]
        %s286 = sld [smem:[#allocation2 + $0x9]]
        %v287 = vstv %s286
        %v288 = vmul.f32 %v285, %v287
        %v289 = vadd.f32 %v284, %v288
        %v290 = vmax.f32 %v289, 0.0
        %v291 = vmin.f32 %v290, 1.0
        %s292 = scalar_lea.vmem %s228, 4
        %293 = vst [vmem:[%s292] sm:$0x7] %v291
        %v294 = vld [vmem:[%s220] sm:$0x7]
        %s295 = sld [smem:[#allocation2 + $0xa]]
        %v296 = vstv %s295
        %v297 = vmul.f32 %v294, %v296
        %s298 = sld [smem:[#allocation4 + $0x2]]
        %v299 = vstv %s298
        %v300 = vadd.f32 %v297, %v299
        %v301 = vld [vmem:[%s236] sm:$0x7]
        %s302 = sld [smem:[#allocation2 + $0xb]]
        %v303 = vstv %s302
        %v304 = vmul.f32 %v301, %v303
        %v305 = vadd.f32 %v300, %v304
        %v306 = vld [vmem:[%s242] sm:$0x7]
        %s307 = sld [smem:[#allocation2 + $0xc]]
        %v308 = vstv %s307
        %v309 = vmul.f32 %v306, %v308
        %v310 = vadd.f32 %v305, %v309
        %v311 = vld [vmem:[%s248] sm:$0x7]
        %s312 = sld [smem:[#allocation2 + $0xd]]
        %v313 = vstv %s312
        %v314 = vmul.f32 %v311, %v313
        %v315 = vadd.f32 %v310, %v314
        %v316 = vld [vmem:[%s254] sm:$0x7]
        %s317 = sld [smem:[#allocation2 + $0xe]]
        %v318 = vstv %s317
        %v319 = vmul.f32 %v316, %v318
        %v320 = vadd.f32 %v315, %v319
        %v321 = vmax.f32 %v320, 0.0
        %v322 = vmin.f32 %v321, 1.0
        %s323 = scalar_lea.vmem %s228, 8
        %324 = vst [vmem:[%s323] sm:$0x7] %v322
        %v325 = vld [vmem:[%s220] sm:$0x7]
        %s326 = sld [smem:[#allocation2 + $0xf]]
        %v327 = vstv %s326
        %v328 = vmul.f32 %v325, %v327
        %s329 = sld [smem:[#allocation4 + $0x3]]
        %v330 = vstv %s329
        %v331 = vadd.f32 %v328, %v330
        %v332 = vld [vmem:[%s236] sm:$0x7]
        %s333 = sld [smem:[#allocation2 + $0x10]]
        %v334 = vstv %s333
        %v335 = vmul.f32 %v332, %v334
        %v336 = vadd.f32 %v331, %v335
        %v337 = vld [vmem:[%s242] sm:$0x7]
        %s338 = sld [smem:[#allocation2 + $0x11]]
        %v339 = vstv %s338
        %v340 = vmul.f32 %v337, %v339
        %v341 = vadd.f32 %v336, %v340
        %v342 = vld [vmem:[%s248] sm:$0x7]
        %s343 = sld [smem:[#allocation2 + $0x12]]
        %v344 = vstv %s343
        %v345 = vmul.f32 %v342, %v344
        %v346 = vadd.f32 %v341, %v345
        %v347 = vld [vmem:[%s254] sm:$0x7]
        %s348 = sld [smem:[#allocation2 + $0x13]]
        %v349 = vstv %s348
        %v350 = vmul.f32 %v347, %v349
        %v351 = vadd.f32 %v346, %v350
        %v352 = vmax.f32 %v351, 0.0
        %v353 = vmin.f32 %v352, 1.0
        %s354 = scalar_lea.vmem %s228, 12
        %355 = vst [vmem:[%s354] sm:$0x7] %v353
        %v356 = vld [vmem:[%s220] sm:$0x7]
        %s357 = sld [smem:[#allocation2 + $0x14]]
        %v358 = vstv %s357
        %v359 = vmul.f32 %v356, %v358
        %s360 = sld [smem:[#allocation4 + $0x4]]
        %v361 = vstv %s360
        %v362 = vadd.f32 %v359, %v361
        %v363 = vld [vmem:[%s236] sm:$0x7]
        %s364 = sld [smem:[#allocation2 + $0x15]]
        %v365 = vstv %s364
        %v366 = vmul.f32 %v363, %v365
        %v367 = vadd.f32 %v362, %v366
        %v368 = vld [vmem:[%s242] sm:$0x7]
        %s369 = sld [smem:[#allocation2 + $0x16]]
        %v370 = vstv %s369
        %v371 = vmul.f32 %v368, %v370
        %v372 = vadd.f32 %v367, %v371
        %v373 = vld [vmem:[%s248] sm:$0x7]
        %s374 = sld [smem:[#allocation2 + $0x17]]
        %v375 = vstv %s374
        %v376 = vmul.f32 %v373, %v375
        %v377 = vadd.f32 %v372, %v376
        %v378 = vld [vmem:[%s254] sm:$0x7]
        %s379 = sld [smem:[#allocation2 + $0x18]]
        %v380 = vstv %s379
        %v381 = vmul.f32 %v378, %v380
        %v382 = vadd.f32 %v377, %v381
        %v383 = vmax.f32 %v382, 0.0
        %v384 = vmin.f32 %v383, 1.0
        %s385 = scalar_lea.vmem %s228, 16
        %386 = vst [vmem:[%s385] sm:$0x7] %v384
        %v387 = vld [vmem:[%s220] sm:$0x7]
        %s388 = sld [smem:[#allocation2 + $0x19]]
        %v389 = vstv %s388
        %v390 = vmul.f32 %v387, %v389
        %s391 = sld [smem:[#allocation4 + $0x5]]
        %v392 = vstv %s391
        %v393 = vadd.f32 %v390, %v392
        %v394 = vld [vmem:[%s236] sm:$0x7]
        %s395 = sld [smem:[#allocation2 + $0x1a]]
        %v396 = vstv %s395
        %v397 = vmul.f32 %v394, %v396
        %v398 = vadd.f32 %v393, %v397
        %v399 = vld [vmem:[%s242] sm:$0x7]
        %s400 = sld [smem:[#allocation2 + $0x1b]]
        %v401 = vstv %s400
        %v402 = vmul.f32 %v399, %v401
        %v403 = vadd.f32 %v398, %v402
        %v404 = vld [vmem:[%s248] sm:$0x7]
        %s405 = sld [smem:[#allocation2 + $0x1c]]
        %v406 = vstv %s405
        %v407 = vmul.f32 %v404, %v406
        %v408 = vadd.f32 %v403, %v407
        %v409 = vld [vmem:[%s254] sm:$0x7]
        %s410 = sld [smem:[#allocation2 + $0x1d]]
        %v411 = vstv %s410
        %v412 = vmul.f32 %v409, %v411
        %v413 = vadd.f32 %v408, %v412
        %v414 = vmax.f32 %v413, 0.0
        %v415 = vmin.f32 %v414, 1.0
        %s416 = scalar_lea.vmem %s228, 20
        %417 = vst [vmem:[%s416] sm:$0x7] %v415
        %v418 = vld [vmem:[%s220] sm:$0x7]
        %s419 = sld [smem:[#allocation2 + $0x1e]]
        %v420 = vstv %s419
        %v421 = vmul.f32 %v418, %v420
        %s422 = sld [smem:[#allocation4 + $0x6]]
        %v423 = vstv %s422
        %v424 = vadd.f32 %v421, %v423
        %v425 = vld [vmem:[%s236] sm:$0x7]
        %s426 = sld [smem:[#allocation2 + $0x1f]]
        %v427 = vstv %s426
        %v428 = vmul.f32 %v425, %v427
        %v429 = vadd.f32 %v424, %v428
        %v430 = vld [vmem:[%s242] sm:$0x7]
        %s431 = sld [smem:[#allocation2 + $0x20]]
        %v432 = vstv %s431
        %v433 = vmul.f32 %v430, %v432
        %v434 = vadd.f32 %v429, %v433
        %v435 = vld [vmem:[%s248] sm:$0x7]
        %s436 = sld [smem:[#allocation2 + $0x21]]
        %v437 = vstv %s436
        %v438 = vmul.f32 %v435, %v437
        %v439 = vadd.f32 %v434, %v438
        %v440 = vld [vmem:[%s254] sm:$0x7]
        %s441 = sld [smem:[#allocation2 + $0x22]]
        %v442 = vstv %s441
        %v443 = vmul.f32 %v440, %v442
        %v444 = vadd.f32 %v439, %v443
        %v445 = vmax.f32 %v444, 0.0
        %v446 = vmin.f32 %v445, 1.0
        %s447 = scalar_lea.vmem %s228, 24
        %448 = vst [vmem:[%s447] sm:$0x7] %v446
        %v449 = vld [vmem:[%s220] sm:$0x7]
        %s450 = sld [smem:[#allocation2 + $0x23]]
        %v451 = vstv %s450
        %v452 = vmul.f32 %v449, %v451
        %s453 = sld [smem:[#allocation4 + $0x7]]
        %v454 = vstv %s453
        %v455 = vadd.f32 %v452, %v454
        %v456 = vld [vmem:[%s236] sm:$0x7]
        %s457 = sld [smem:[#allocation2 + $0x24]]
        %v458 = vstv %s457
        %v459 = vmul.f32 %v456, %v458
        %v460 = vadd.f32 %v455, %v459
        %v461 = vld [vmem:[%s242] sm:$0x7]
        %s462 = sld [smem:[#allocation2 + $0x25]]
        %v463 = vstv %s462
        %v464 = vmul.f32 %v461, %v463
        %v465 = vadd.f32 %v460, %v464
        %v466 = vld [vmem:[%s248] sm:$0x7]
        %s467 = sld [smem:[#allocation2 + $0x26]]
        %v468 = vstv %s467
        %v469 = vmul.f32 %v466, %v468
        %v470 = vadd.f32 %v465, %v469
        %v471 = vld [vmem:[%s254] sm:$0x7]
        %s472 = sld [smem:[#allocation2 + $0x27]]
        %v473 = vstv %s472
        %v474 = vmul.f32 %v471, %v473
        %v475 = vadd.f32 %v470, %v474
        %v476 = vmax.f32 %v475, 0.0
        %v477 = vmin.f32 %v476, 1.0
        %s478 = scalar_lea.vmem %s228, 28
        %479 = vst [vmem:[%s478] sm:$0x7] %v477
        %p480 = scmp.lt.s32.totalorder %s20, 1
        %s481 = scalar_select %p480, %s20, 1
        %p482 = scmp.lt.s32.totalorder %s21, 0
        %s483 = scalar_select %p482, %s21, 0
        %s484 = smul.addr %s481, 8
        %s485 = sadd.s32 %s483, %s484
        %s486 = smul.addr %s485, 4
        %s487 = scalar_lea.vmem %s3, %s486
        // Predicated region
        $region41: #{conv1x1_pad1_hardsig.1} parent=31 // pred_check
          %p488 = pneg %p118
        $region42: #{conv1x1_pad1_hardsig.1} parent=31 // pred_check_branch
          %490 = sbr.rel (%p488) target = $region44
        $region43: #{conv1x1_pad1_hardsig.1} parent=31 // pred_region
          _
        $region44: #{conv1x1_pad1_hardsig.1} parent=31 // pred_fallthru
          _
      $region32: #{conv1x1_pad1_hardsig.1} parent=5 // pred_fallthru
        _
      %p491 = scmp.le.s32.totalorder 2, %s11
      // Predicated region
      $region45: #{conv1x1_pad1_hardsig.1} parent=5 // pred_check
        %p492 = pneg %p491
      $region46: #{conv1x1_pad1_hardsig.1} parent=5 // pred_check_branch
        %494 = sbr.rel (%p492) target = $region48
      $region47: #{conv1x1_pad1_hardsig.1} parent=5 // pred_region
        %s495 = ssub.s32 %s11, 2
        // Predicated region
        $region49: #{conv1x1_pad1_hardsig.1} parent=47 // pred_check
          %p496 = pneg %p124
        $region50: #{conv1x1_pad1_hardsig.1} parent=47 // pred_check_branch
          %498 = sbr.rel (%p496) target = $region52
        $region51: #{conv1x1_pad1_hardsig.1} parent=47 // pred_region
          %p499 = scmp.lt.s32.totalorder %s22, 1
          %s500 = scalar_select %p499, %s22, 1
          %p501 = scmp.lt.s32.totalorder %s23, 0
          %s502 = scalar_select %p501, %s23, 0
          %s503 = smul.addr %s500, 8
          %s504 = sadd.s32 %s502, %s503
          %s505 = smul.addr %s504, 4
          %s506 = scalar_lea.vmem %s3, %s505
        $region52: #{conv1x1_pad1_hardsig.1} parent=47 // pred_fallthru
          _
      $region48: #{conv1x1_pad1_hardsig.1} parent=5 // pred_fallthru
        _
    $region6: #{conv1x1_pad1_hardsig.1} parent=1 // loop_footer
      %s15 = sadd.s32 1, %s11
    $region7: #{conv1x1_pad1_hardsig.1} parent=1 // loop_footer_branch
      %10 = sbr.rel target = $region3
    $region8: #{conv1x1_pad1_hardsig.1} parent=1 // loop_exit
      _
    %507 = vsyncpa [#allocation3], 1
    %s508 = scalar_lea.sflag [#allocation3], 1
    %509 = vsyncpa %s508, 1
    %510 = vsyncpa [#allocation5], 1

</llo_original>
